<compile_context>
chip_gen: v7x
topology: tpu7x:2x2x1
jax: 0.10.0
libtpu: 0.0.40
codegen_flags: <defaults>
</compile_context>

<pallas_src>
import functools

import jax
import jax.numpy as jnp
from jax.experimental import pallas as pl
from jax.experimental.pallas import tpu as pltpu

LN_EPS = 1e-12
_INV_SQRT2 = 0.7071067811865475


def _round_up(x, m):
    return ((x + m - 1) // m) * m


def _feedforward_kernel(x_ref, w1_ref, b1_ref, w2_ref, b2_ref,
                        gamma_ref, beta_ref, out_ref, *, matmul_dtype):
    x = x_ref[...]                                        # (TM, H) f32

    # dense_1: (TM, H) @ (H, 4H) on the MXU, f32 accumulation.
    h = jnp.dot(x.astype(matmul_dtype), w1_ref[...],
                preferred_element_type=jnp.float32)
    h = h + b1_ref[...]                                   # (1, 4H) broadcasts

    # Exact GELU (erf-based), matching torch.nn.GELU() default.
    h = 0.5 * h * (1.0 + jax.lax.erf(h * jnp.float32(_INV_SQRT2)))

    # dense_2: (TM, 4H) @ (4H, H) on the MXU, f32 accumulation.
    y = jnp.dot(h.astype(matmul_dtype), w2_ref[...],
                preferred_element_type=jnp.float32)
    y = y + b2_ref[...]                                   # (1, H) broadcasts

    # Dropout: eval mode -> identity (no masking applied).

    # Residual + TF-style LayerNorm (biased variance, eps inside sqrt).
    z = y + x
    u = jnp.mean(z, axis=-1, keepdims=True)
    d = z - u
    s = jnp.mean(d * d, axis=-1, keepdims=True)
    zn = d * jax.lax.rsqrt(s + LN_EPS)
    out_ref[...] = (gamma_ref[...] * zn + beta_ref[...]).astype(out_ref.dtype)


def feedforward_pallas(x, w1, b1, w2, b2, gamma, beta, *,
                       block_rows=256, matmul_dtype=jnp.float32):
    """x: (B, S, H) float32. Returns (B, S, H) float32.

    matmul_dtype: dtype of the MXU operands for the two dots. jnp.bfloat16
    roughly doubles MXU throughput and halves weight DMA bytes on v6e/v7x;
    accumulation and all elementwise math stay f32.
    """
    B, S, H = x.shape
    N = B * S
    H4 = 4 * H
    x2 = x.reshape(N, H).astype(jnp.float32)

    # Row tile: multiple of 8 (f32 sublane), clamped to the (padded) problem.
    tm = min(_round_up(block_rows, 8), _round_up(N, 8))
    n_pad = _round_up(N, tm)
    if n_pad != N:
        x2 = jnp.pad(x2, ((0, n_pad - N), (0, 0)))
    grid = (n_pad // tm,)

    w1m = w1.astype(matmul_dtype)
    w2m = w2.astype(matmul_dtype)
    b1_2 = b1.reshape(1, H4).astype(jnp.float32)
    b2_2 = b2.reshape(1, H).astype(jnp.float32)
    gamma_2 = gamma.reshape(1, H).astype(jnp.float32)
    beta_2 = beta.reshape(1, H).astype(jnp.float32)

    # x / out tiles march along the row grid (software-pipelined).
    row_spec = pl.BlockSpec((tm, H), lambda i: (i, 0))
    # Constant block index -> DMA'd once, stays resident across grid steps.
    # TODO(synk): pipeline_mode=pl.Buffered(1) on these would drop the unused
    # second weight buffer for very large H; left at default for robustness.
    const = lambda shape: pl.BlockSpec(shape, lambda i: (0, 0))

    itemsize = jnp.dtype(matmul_dtype).itemsize
    cost = pl.CostEstimate(
        flops=4 * n_pad * H * H4,                        # two (N,H,4H) matmuls
        transcendentals=n_pad * H4,                      # erf in GELU
        bytes_accessed=(x2.size + n_pad * H) * 4         # x in + out
        + (w1m.size + w2m.size) * itemsize
        + (b1_2.size + b2_2.size + gamma_2.size + beta_2.size) * 4,
    )

    out = pl.pallas_call(
        functools.partial(_feedforward_kernel, matmul_dtype=matmul_dtype),
        out_shape=jax.ShapeDtypeStruct((n_pad, H), jnp.float32),
        grid=grid,
        in_specs=[
            row_spec,               # x rows (pipelined)
            const((H, H4)),         # W1 (resident)
            const((1, H4)),         # b1
            const((H4, H)),         # W2 (resident)
            const((1, H)),          # b2
            const((1, H)),          # gamma
            const((1, H)),          # beta
        ],
        out_specs=row_spec,
        compiler_params=pltpu.CompilerParams(
            dimension_semantics=("parallel",),           # megacore on v7x
            vmem_limit_bytes=48 << 20,                   # fits v7x 64 MiB VMEM
        ),
        cost_estimate=cost,
    )(x2, w1m, b1_2, w2m, b2_2, gamma_2, beta_2)

    return out[:N].reshape(B, S, H)


def _reference(x, w1, b1, w2, b2, gamma, beta):
    h = jnp.dot(x, w1) + b1
    h = 0.5 * h * (1.0 + jax.lax.erf(h / jnp.sqrt(2.0)))
    y = jnp.dot(h, w2) + b2
    z = y + x
    u = jnp.mean(z, axis=-1, keepdims=True)
    s = jnp.mean((z - u) ** 2, axis=-1, keepdims=True)
    zn = (z - u) / jnp.sqrt(s + LN_EPS)
    return gamma * zn + beta


if __name__ == "__main__":
    B, S, H = 2, 8, 32          # small shapes: batch=2, seq=8, hidden=32
    key = jax.random.PRNGKey(0)
    kx, k1, k2, k3, k4 = jax.random.split(key, 5)

    x = jax.random.normal(kx, (B, S, H), dtype=jnp.float32)

    # Deterministic parameter init (shapes per nn.Linear / LayerNorm).
    w1 = jax.random.normal(k1, (H, 4 * H), dtype=jnp.float32) * 0.02   # dense_1 (in, out)
    b1 = jax.random.normal(k2, (4 * H,), dtype=jnp.float32) * 0.02
    w2 = jax.random.normal(k3, (4 * H, H), dtype=jnp.float32) * 0.02   # dense_2 (in, out)
    b2 = jax.random.normal(k4, (H,), dtype=jnp.float32) * 0.02
    gamma = jnp.ones((H,), dtype=jnp.float32)                          # LayerNorm weight
    beta = jnp.zeros((H,), dtype=jnp.float32)                          # LayerNorm bias

    ref = _reference(x, w1, b1, w2, b2, gamma, beta)

    # Exact path (f32 MXU operands) -> matches the PyTorch module tightly.
    out_f32 = jax.block_until_ready(
        feedforward_pallas(x, w1, b1, w2, b2, gamma, beta,
                           matmul_dtype=jnp.float32))
    assert jnp.allclose(out_f32, ref, atol=1e-4, rtol=1e-4), "f32 path mismatch"

    # Fast path (bf16 MXU operands, f32 accumulation) -> preferred on v6e/v7x.
    out_bf16 = jax.block_until_ready(
        feedforward_pallas(x, w1, b1, w2, b2, gamma, beta,
                           matmul_dtype=jnp.bfloat16))
    assert jnp.allclose(out_bf16, ref, atol=5e-2, rtol=5e-2), "bf16 path mismatch"

    print("KERNEL_OK")
</pallas_src>

<mosaic_0001>
module attributes {stable_mosaic.version = 11 : i64} {
  func.func @_feedforward_kernel(%arg0: i32, %arg1: memref<16x32xf32, #tpu.memory_space<vmem>>, %arg2: memref<32x128xf32, #tpu.memory_space<vmem>>, %arg3: memref<1x128xf32, #tpu.memory_space<vmem>>, %arg4: memref<128x32xf32, #tpu.memory_space<vmem>>, %arg5: memref<1x32xf32, #tpu.memory_space<vmem>>, %arg6: memref<1x32xf32, #tpu.memory_space<vmem>>, %arg7: memref<1x32xf32, #tpu.memory_space<vmem>>, %arg8: memref<16x32xf32, #tpu.memory_space<vmem>>) attributes {dimension_semantics = [#tpu.dimension_semantics<parallel>], iteration_bounds = array<i64: 1>, scalar_prefetch = 0 : i64, scratch_operands = 0 : i64, tpu.core_type = #tpu.core_type<tc>, window_params = [{transform_indices = @transform_0, window_bounds = array<i64: 16, 32>}, {pipeline_mode = #tpu.pipeline_mode<synchronous>, transform_indices = @transform_1, window_bounds = array<i64: 32, 128>}, {pipeline_mode = #tpu.pipeline_mode<synchronous>, transform_indices = @transform_2, window_bounds = array<i64: 1, 128>}, {pipeline_mode = #tpu.pipeline_mode<synchronous>, transform_indices = @transform_3, window_bounds = array<i64: 128, 32>}, {pipeline_mode = #tpu.pipeline_mode<synchronous>, transform_indices = @transform_4, window_bounds = array<i64: 1, 32>}, {pipeline_mode = #tpu.pipeline_mode<synchronous>, transform_indices = @transform_5, window_bounds = array<i64: 1, 32>}, {pipeline_mode = #tpu.pipeline_mode<synchronous>, transform_indices = @transform_6, window_bounds = array<i64: 1, 32>}, {transform_indices = @transform_7, window_bounds = array<i64: 16, 32>}]} {
    %c0 = arith.constant 0 : index
    %c0_0 = arith.constant 0 : index
    %0 = vector.load %arg1[%c0, %c0_0] : memref<16x32xf32, #tpu.memory_space<vmem>>, vector<16x32xf32>
    %c0_1 = arith.constant 0 : index
    %c0_2 = arith.constant 0 : index
    %1 = vector.load %arg2[%c0_1, %c0_2] : memref<32x128xf32, #tpu.memory_space<vmem>>, vector<32x128xf32>
    %cst = arith.constant dense<0.000000e+00> : vector<16x128xf32>
    %2 = tpu.matmul %0, %1, %cst {dimension_numbers = #tpu.dot_dimension_numbers<[1], [0], [0], [1], [0, 0, 1, 1], [], []>} : vector<16x32xf32>, vector<32x128xf32>, vector<16x128xf32> -> vector<16x128xf32>
    %c0_3 = arith.constant 0 : index
    %c0_4 = arith.constant 0 : index
    %3 = vector.load %arg3[%c0_3, %c0_4] : memref<1x128xf32, #tpu.memory_space<vmem>>, vector<1x128xf32>
    %4 = vector.broadcast %3 : vector<1x128xf32> to vector<16x128xf32>
    %5 = arith.addf %2, %4 : vector<16x128xf32>
    %cst_5 = arith.constant 5.000000e-01 : f32
    %6 = vector.broadcast %cst_5 : f32 to vector<16x128xf32>
    %7 = arith.mulf %6, %5 : vector<16x128xf32>
    %cst_6 = arith.constant 0.707106769 : f32
    %8 = vector.broadcast %cst_6 : f32 to vector<16x128xf32>
    %9 = arith.mulf %5, %8 : vector<16x128xf32>
    %10 = math.erf %9 : vector<16x128xf32>
    %cst_7 = arith.constant 1.000000e+00 : f32
    %11 = vector.broadcast %cst_7 : f32 to vector<16x128xf32>
    %12 = arith.addf %11, %10 : vector<16x128xf32>
    %13 = arith.mulf %7, %12 : vector<16x128xf32>
    %c0_8 = arith.constant 0 : index
    %c0_9 = arith.constant 0 : index
    %14 = vector.load %arg4[%c0_8, %c0_9] : memref<128x32xf32, #tpu.memory_space<vmem>>, vector<128x32xf32>
    %cst_10 = arith.constant dense<0.000000e+00> : vector<16x32xf32>
    %15 = tpu.matmul %13, %14, %cst_10 {dimension_numbers = #tpu.dot_dimension_numbers<[1], [0], [0], [1], [0, 0, 1, 1], [], []>} : vector<16x128xf32>, vector<128x32xf32>, vector<16x32xf32> -> vector<16x32xf32>
    %c0_11 = arith.constant 0 : index
    %c0_12 = arith.constant 0 : index
    %16 = vector.load %arg5[%c0_11, %c0_12] : memref<1x32xf32, #tpu.memory_space<vmem>>, vector<1x32xf32>
    %17 = vector.broadcast %16 : vector<1x32xf32> to vector<16x32xf32>
    %18 = arith.addf %15, %17 : vector<16x32xf32>
    %19 = arith.addf %18, %0 : vector<16x32xf32>
    %cst_13 = arith.constant dense<0.000000e+00> : vector<16xf32>
    %20 = vector.multi_reduction <add>, %19, %cst_13 [1] : vector<16x32xf32> to vector<16xf32>
    %21 = vector.shape_cast %20 : vector<16xf32> to vector<16x1xf32>
    %cst_14 = arith.constant 3.200000e+01 : f32
    %22 = vector.broadcast %cst_14 : f32 to vector<16x1xf32>
    %23 = arith.divf %21, %22 : vector<16x1xf32>
    %24 = vector.broadcast %23 : vector<16x1xf32> to vector<16x32xf32>
    %25 = arith.subf %19, %24 : vector<16x32xf32>
    %26 = arith.mulf %25, %25 : vector<16x32xf32>
    %cst_15 = arith.constant dense<0.000000e+00> : vector<16xf32>
    %27 = vector.multi_reduction <add>, %26, %cst_15 [1] : vector<16x32xf32> to vector<16xf32>
    %28 = vector.shape_cast %27 : vector<16xf32> to vector<16x1xf32>
    %cst_16 = arith.constant 3.200000e+01 : f32
    %29 = vector.broadcast %cst_16 : f32 to vector<16x1xf32>
    %30 = arith.divf %28, %29 : vector<16x1xf32>
    %cst_17 = arith.constant 9.99999996E-13 : f32
    %31 = vector.broadcast %cst_17 : f32 to vector<16x1xf32>
    %32 = arith.addf %30, %31 : vector<16x1xf32>
    %33 = math.rsqrt %32 : vector<16x1xf32>
    %34 = vector.broadcast %33 : vector<16x1xf32> to vector<16x32xf32>
    %35 = arith.mulf %25, %34 : vector<16x32xf32>
    %c0_18 = arith.constant 0 : index
    %c0_19 = arith.constant 0 : index
    %36 = vector.load %arg6[%c0_18, %c0_19] : memref<1x32xf32, #tpu.memory_space<vmem>>, vector<1x32xf32>
    %37 = vector.broadcast %36 : vector<1x32xf32> to vector<16x32xf32>
    %38 = arith.mulf %37, %35 : vector<16x32xf32>
    %c0_20 = arith.constant 0 : index
    %c0_21 = arith.constant 0 : index
    %39 = vector.load %arg7[%c0_20, %c0_21] : memref<1x32xf32, #tpu.memory_space<vmem>>, vector<1x32xf32>
    %40 = vector.broadcast %39 : vector<1x32xf32> to vector<16x32xf32>
    %41 = arith.addf %38, %40 : vector<16x32xf32>
    %c0_22 = arith.constant 0 : index
    %c0_23 = arith.constant 0 : index
    %42 = vector.load %arg8[%c0_22, %c0_23] : memref<16x32xf32, #tpu.memory_space<vmem>>, vector<16x32xf32>
    tpu.vector_store %arg8[%c0_22, %c0_23], %41 {strides = array<i32>} : memref<16x32xf32, #tpu.memory_space<vmem>>, vector<16x32xf32>,
    return
  }
  func.func @transform_0(%arg0: i32) -> (i32, i32) {
    %c0_i32 = arith.constant 0 : i32
    %c0_i32_0 = arith.constant 0 : i32
    return %arg0, %c0_i32 : i32, i32
  }
  func.func @transform_1(%arg0: i32) -> (i32, i32) {
    %c0_i32 = arith.constant 0 : i32
    %c0_i32_0 = arith.constant 0 : i32
    %c0_i32_1 = arith.constant 0 : i32
    return %c0_i32, %c0_i32_0 : i32, i32
  }
  func.func @transform_2(%arg0: i32) -> (i32, i32) {
    %c0_i32 = arith.constant 0 : i32
    %c0_i32_0 = arith.constant 0 : i32
    %c0_i32_1 = arith.constant 0 : i32
    return %c0_i32, %c0_i32_0 : i32, i32
  }
  func.func @transform_3(%arg0: i32) -> (i32, i32) {
    %c0_i32 = arith.constant 0 : i32
    %c0_i32_0 = arith.constant 0 : i32
    %c0_i32_1 = arith.constant 0 : i32
    return %c0_i32, %c0_i32_0 : i32, i32
  }
  func.func @transform_4(%arg0: i32) -> (i32, i32) {
    %c0_i32 = arith.constant 0 : i32
    %c0_i32_0 = arith.constant 0 : i32
    %c0_i32_1 = arith.constant 0 : i32
    return %c0_i32, %c0_i32_0 : i32, i32
  }
  func.func @transform_5(%arg0: i32) -> (i32, i32) {
    %c0_i32 = arith.constant 0 : i32
    %c0_i32_0 = arith.constant 0 : i32
    %c0_i32_1 = arith.constant 0 : i32
    return %c0_i32, %c0_i32_0 : i32, i32
  }
  func.func @transform_6(%arg0: i32) -> (i32, i32) {
    %c0_i32 = arith.constant 0 : i32
    %c0_i32_0 = arith.constant 0 : i32
    %c0_i32_1 = arith.constant 0 : i32
    return %c0_i32, %c0_i32_0 : i32, i32
  }
  func.func @transform_7(%arg0: i32) -> (i32, i32) {
    %c0_i32 = arith.constant 0 : i32
    %c0_i32_0 = arith.constant 0 : i32
    return %arg0, %c0_i32 : i32, i32
  }
}

</mosaic_0001>

<llo_original>
// kernel: tpu_custom_call.1
$region0: #{tpu_custom_call.1}
  #allocation0 [shape = 'u32[]', space=smem, size = 0x4, offset = 0x4, fixed_abs, tag = 'smem constant byte address 0x4 - core index']
  #allocation1 [shape = 'u32[144,128]{1,0:T(1,128)}', space=vmem, size = 0x12000, scoped, tag = 'internal scratch']
  %s0 = inlined_call_operand.vmem [shape: f32[16,32], index: 0, kind: input, shape index: {}]
  %s1 = inlined_call_operand.vmem [shape: f32[32,128], index: 1, kind: input, shape index: {}]
  %s2 = inlined_call_operand.vmem [shape: f32[1,128], index: 2, kind: input, shape index: {}]
  %s3 = inlined_call_operand.vmem [shape: f32[128,32], index: 3, kind: input, shape index: {}]
  %s4 = inlined_call_operand.vmem [shape: f32[1,32], index: 4, kind: input, shape index: {}]
  %s5 = inlined_call_operand.vmem [shape: f32[1,32], index: 5, kind: input, shape index: {}]
  %s6 = inlined_call_operand.vmem [shape: f32[1,32], index: 6, kind: input, shape index: {}]
  %s7 = inlined_call_operand.hbm [shape: f32[16,32], index: 7, kind: output, shape index: {}]
  %s8 = sld [smem:[#allocation0]]
  $region38: #{tpu_custom_call.1} parent=0
    _
  %s10 = ssub.s32 1, %s8
  %s11 = scalar_select 0, %s10, %s8
  $region1: #{tpu_custom_call.1} parent=0
    #allocation2 [shape = 'u8[8192]{0}', space=vmem, size = 0x2000, scoped, tag = 'output window, operand 0, single buffered']
    #allocation3 [shape = 's32[1]{0}', space=sflag, size = 0x4, scoped, tag = 'scoped memory for tpu_custom_call.1']
    %12 = vsyncpa [#allocation3], 0
    // Predicated region
    $region2: #{tpu_custom_call.1} parent=1 // pred_check
      _
    $region3: #{tpu_custom_call.1} parent=1 // pred_check_branch
      %14 = sbr.rel (0) target = $region5
    $region4: #{tpu_custom_call.1} parent=1 // pred_region
      _
    $region5: #{tpu_custom_call.1} parent=1 // pred_fallthru
      _
    // Predicated region
    $region6: #{tpu_custom_call.1} parent=1 // pred_check
      _
    $region7: #{tpu_custom_call.1} parent=1 // pred_check_branch
      %16 = sbr.rel (0) target = $region9
    $region8: #{tpu_custom_call.1} parent=1 // pred_region
      _
    $region9: #{tpu_custom_call.1} parent=1 // pred_fallthru
      _
    // Predicated region
    $region10: #{tpu_custom_call.1} parent=1 // pred_check
      _
    $region11: #{tpu_custom_call.1} parent=1 // pred_check_branch
      %18 = sbr.rel (0) target = $region13
    $region12: #{tpu_custom_call.1} parent=1 // pred_region
      _
    $region13: #{tpu_custom_call.1} parent=1 // pred_fallthru
      _
    // Predicated region
    $region14: #{tpu_custom_call.1} parent=1 // pred_check
      _
    $region15: #{tpu_custom_call.1} parent=1 // pred_check_branch
      %20 = sbr.rel (0) target = $region17
    $region16: #{tpu_custom_call.1} parent=1 // pred_region
      _
    $region17: #{tpu_custom_call.1} parent=1 // pred_fallthru
      _
    // Predicated region
    $region18: #{tpu_custom_call.1} parent=1 // pred_check
      _
    $region19: #{tpu_custom_call.1} parent=1 // pred_check_branch
      %22 = sbr.rel (0) target = $region21
    $region20: #{tpu_custom_call.1} parent=1 // pred_region
      _
    $region21: #{tpu_custom_call.1} parent=1 // pred_fallthru
      _
    // Predicated region
    $region22: #{tpu_custom_call.1} parent=1 // pred_check
      _
    $region23: #{tpu_custom_call.1} parent=1 // pred_check_branch
      %24 = sbr.rel (0) target = $region25
    $region24: #{tpu_custom_call.1} parent=1 // pred_region
      _
    $region25: #{tpu_custom_call.1} parent=1 // pred_fallthru
      _
    // Predicated region
    $region26: #{tpu_custom_call.1} parent=1 // pred_check
      _
    $region27: #{tpu_custom_call.1} parent=1 // pred_check_branch
      %26 = sbr.rel (0) target = $region29
    $region28: #{tpu_custom_call.1} parent=1 // pred_region
      _
    $region29: #{tpu_custom_call.1} parent=1 // pred_fallthru
      _
    %v27 = vld [vmem:[%s0] sm:$0xff]
    %v28 = vld [vmem:[%s0 + $0x8] sm:$0xff]
    %v29 = vld [vmem:[%s1] sm:$0xff]
    %v30 = vld [vmem:[%s1 + $0x8] sm:$0xff]
    %v31 = vld [vmem:[%s1 + $0x10] sm:$0xff]
    %v32 = vld [vmem:[%s1 + $0x18] sm:$0xff]
    %v33 = vld [vmem:[%s2] sm:$0x1]
    %v35 = vlaneseq
    %v36 = vshrl.u32 %v35, 7
    %v37 = vsub.s32 0, %v36
    %v38 = vrot.slane %v33, %v37
    %vm40 = vcmask 261120
    %v42 = vsel %vm40, %v27, 0
    %v45 = vsel %vm40, %v28, 0
    %47 = vmatprep.subr.mxu0 0.0
    %48 = vmatpush1.msra.mxu0 %v29
    %49 = vmatprep.subr.mxu0 0.0
    %50 = vmatpush1.msra.mxu0 %v30
    %51 = vmatprep.subr.mxu0 0.0
    %52 = vmatpush1.msra.mxu0 %v31
    %53 = vmatprep.subr.mxu0 0.0
    %54 = vmatpush1.msra.mxu0 %v32
    %55 = vmatprep.subr.mxu0 0.0
    %56 = vmatpush1.msra.mxu0 0.0
    %57 = vmatprep.subr.mxu0 0.0
    %58 = vmatpush1.msra.mxu0 0.0
    %59 = vmatprep.subr.mxu0 0.0
    %60 = vmatpush1.msra.mxu0 0.0
    %61 = vmatprep.subr.mxu0 0.0
    %62 = vmatpush1.msra.mxu0 0.0
    %63 = vmatprep.subr.mxu0 0.0
    %64 = vmatpush1.msra.mxu0 0.0
    %65 = vmatprep.subr.mxu0 0.0
    %66 = vmatpush1.msra.mxu0 0.0
    %67 = vmatprep.subr.mxu0 0.0
    %68 = vmatpush1.msra.mxu0 0.0
    %69 = vmatprep.subr.mxu0 0.0
    %70 = vmatpush1.msra.mxu0 0.0
    %71 = vmatprep.subr.mxu0 0.0
    %72 = vmatpush1.msra.mxu0 0.0
    %73 = vmatprep.subr.mxu0 0.0
    %74 = vmatpush1.msra.mxu0 0.0
    %75 = vmatprep.subr.mxu0 0.0
    %76 = vmatpush1.msra.mxu0 0.0
    %77 = vmatprep.subr.mxu0 0.0
    %78 = vmatpush1.msra.mxu0 0.0
    %79 = vmatprep.subr.mxu0 0.0
    %80 = vmatpush1.msra.mxu0 0.0
    %81 = vmatprep.subr.mxu0 0.0
    %82 = vmatpush1.msra.mxu0 0.0
    %83 = vmatprep.subr.mxu0 0.0
    %84 = vmatpush1.msra.mxu0 0.0
    %85 = vmatprep.subr.mxu0 0.0
    %86 = vmatpush1.msra.mxu0 0.0
    %87 = vmatprep.subr.mxu0 0.0
    %88 = vmatpush1.msra.mxu0 0.0
    %89 = vmatprep.subr.mxu0 0.0
    %90 = vmatpush1.msra.mxu0 0.0
    %91 = vmatprep.subr.mxu0 0.0
    %92 = vmatpush1.msra.mxu0 0.0
    %93 = vmatprep.subr.mxu0 0.0
    %94 = vmatpush1.msra.mxu0 0.0
    %95 = vmatprep.subr.mxu0 0.0
    %96 = vmatpush1.msra.mxu0 0.0
    %97 = vmatprep.subr.mxu0 0.0
    %98 = vmatpush1.msra.mxu0 0.0
    %99 = vmatprep.subr.mxu0 0.0
    %100 = vmatpush1.msra.mxu0 0.0
    %101 = vmatprep.subr.mxu0 0.0
    %102 = vmatpush1.msra.mxu0 0.0
    %103 = vmatprep.subr.mxu0 0.0
    %104 = vmatpush1.msra.mxu0 0.0
    %105 = vmatprep.subr.mxu0 0.0
    %106 = vmatpush1.msra.mxu0 0.0
    %107 = vmatprep.subr.mxu0 0.0
    %108 = vmatpush1.msra.mxu0 0.0
    %109 = vmatprep.subr.mxu0 0.0
    %110 = vmatpush1.msra.mxu0 0.0
    %111 = vmatprep.mubr.f32.mxu0 0.0
    %112 = vmatmul.mubr.f32.gmra.mrb[0].mxu0 %v42
    %v113 = vpop.f32.mrb[0].mxu0
    %v114 = vadd.f32 %v38, %v113
    %v115 = vpop.f32.mrb[0].mxu0
    %116 = vmatprep.mubr.f32.mxu0 0.0
    %117 = vmatmul.mubr.f32.gmra.mrb[0].mxu0 %v45
    %v118 = vpop.f32.mrb[0].mxu0
    %v119 = vadd.f32 %v38, %v118
    %v120 = vpop.f32.mrb[0].mxu0
    %121 = vdwg.mxu0
    %v122 = vmul.f32 %v114, 0.5
    %v123 = vmul.f32 %v119, 0.5
    %v124 = vmul.f32 %v114, 0.70710677
    %v125 = vmul.f32 %v119, 0.70710677
    %v126 = verf.f32.pop %v124
    %v127 = verf.f32.pop %v125
    %v128 = vadd.f32 %v126, 1.0
    %v129 = vadd.f32 %v127, 1.0
    %v130 = vmul.f32 %v122, %v128
    %v131 = vmul.f32 %v123, %v129
    %v132 = vld [vmem:[%s3] sm:$0xff]
    %v133 = vld [vmem:[%s3 + $0x8] sm:$0xff]
    %v134 = vld [vmem:[%s3 + $0x10] sm:$0xff]
    %v135 = vld [vmem:[%s3 + $0x18] sm:$0xff]
    %v136 = vld [vmem:[%s3 + $0x20] sm:$0xff]
    %v137 = vld [vmem:[%s3 + $0x28] sm:$0xff]
    %v138 = vld [vmem:[%s3 + $0x30] sm:$0xff]
    %v139 = vld [vmem:[%s3 + $0x38] sm:$0xff]
    %v140 = vld [vmem:[%s3 + $0x40] sm:$0xff]
    %v141 = vld [vmem:[%s3 + $0x48] sm:$0xff]
    %v142 = vld [vmem:[%s3 + $0x50] sm:$0xff]
    %v143 = vld [vmem:[%s3 + $0x58] sm:$0xff]
    %v144 = vld [vmem:[%s3 + $0x60] sm:$0xff]
    %v145 = vld [vmem:[%s3 + $0x68] sm:$0xff]
    %v146 = vld [vmem:[%s3 + $0x70] sm:$0xff]
    %v147 = vld [vmem:[%s3 + $0x78] sm:$0xff]
    %v148 = vld [vmem:[%s4] sm:$0x1]
    %v150 = vlaneseq
    %v151 = vshrl.u32 %v150, 7
    %v152 = vsub.s32 0, %v151
    %v153 = vrot.slane %v148, %v152
    %155 = vmatprep.subr.mxu0 0.0
    %156 = vmatpush1.msra.mxu0 %v132
    %157 = vmatprep.subr.mxu0 0.0
    %158 = vmatpush1.msra.mxu0 %v133
    %159 = vmatprep.subr.mxu0 0.0
    %160 = vmatpush1.msra.mxu0 %v134
    %161 = vmatprep.subr.mxu0 0.0
    %162 = vmatpush1.msra.mxu0 %v135
    %163 = vmatprep.subr.mxu0 0.0
    %164 = vmatpush1.msra.mxu0 %v136
    %165 = vmatprep.subr.mxu0 0.0
    %166 = vmatpush1.msra.mxu0 %v137
    %167 = vmatprep.subr.mxu0 0.0
    %168 = vmatpush1.msra.mxu0 %v138
    %169 = vmatprep.subr.mxu0 0.0
    %170 = vmatpush1.msra.mxu0 %v139
    %171 = vmatprep.subr.mxu0 0.0
    %172 = vmatpush1.msra.mxu0 %v140
    %173 = vmatprep.subr.mxu0 0.0
    %174 = vmatpush1.msra.mxu0 %v141
    %175 = vmatprep.subr.mxu0 0.0
    %176 = vmatpush1.msra.mxu0 %v142
    %177 = vmatprep.subr.mxu0 0.0
    %178 = vmatpush1.msra.mxu0 %v143
    %179 = vmatprep.subr.mxu0 0.0
    %180 = vmatpush1.msra.mxu0 %v144
    %181 = vmatprep.subr.mxu0 0.0
    %182 = vmatpush1.msra.mxu0 %v145
    %183 = vmatprep.subr.mxu0 0.0
    %184 = vmatpush1.msra.mxu0 %v146
    %185 = vmatprep.subr.mxu0 0.0
    %186 = vmatpush1.msra.mxu0 %v147
    %187 = vmatprep.subr.mxu0 0.0
    %188 = vmatpush1.msra.mxu0 0.0
    %189 = vmatprep.subr.mxu0 0.0
    %190 = vmatpush1.msra.mxu0 0.0
    %191 = vmatprep.subr.mxu0 0.0
    %192 = vmatpush1.msra.mxu0 0.0
    %193 = vmatprep.subr.mxu0 0.0
    %194 = vmatpush1.msra.mxu0 0.0
    %195 = vmatprep.subr.mxu0 0.0
    %196 = vmatpush1.msra.mxu0 0.0
    %197 = vmatprep.subr.mxu0 0.0
    %198 = vmatpush1.msra.mxu0 0.0
    %199 = vmatprep.subr.mxu0 0.0
    %200 = vmatpush1.msra.mxu0 0.0
    %201 = vmatprep.subr.mxu0 0.0
    %202 = vmatpush1.msra.mxu0 0.0
    %203 = vmatprep.subr.mxu0 0.0
    %204 = vmatpush1.msra.mxu0 0.0
    %205 = vmatprep.subr.mxu0 0.0
    %206 = vmatpush1.msra.mxu0 0.0
    %207 = vmatprep.subr.mxu0 0.0
    %208 = vmatpush1.msra.mxu0 0.0
    %209 = vmatprep.subr.mxu0 0.0
    %210 = vmatpush1.msra.mxu0 0.0
    %211 = vmatprep.subr.mxu0 0.0
    %212 = vmatpush1.msra.mxu0 0.0
    %213 = vmatprep.subr.mxu0 0.0
    %214 = vmatpush1.msra.mxu0 0.0
    %215 = vmatprep.subr.mxu0 0.0
    %216 = vmatpush1.msra.mxu0 0.0
    %217 = vmatprep.subr.mxu0 0.0
    %218 = vmatpush1.msra.mxu0 0.0
    %219 = vmatprep.mubr.f32.mxu0 0.0
    %220 = vmatmul.mubr.f32.gmra.mrb[0].mxu0 %v130
    %v221 = vpop.f32.mrb[0].mxu0
    %v222 = vadd.f32 %v153, %v221
    %v223 = vpop.f32.mrb[0].mxu0
    %224 = vmatprep.mubr.f32.mxu0 0.0
    %225 = vmatmul.mubr.f32.gmra.mrb[0].mxu0 %v131
    %v226 = vpop.f32.mrb[0].mxu0
    %v227 = vadd.f32 %v153, %v226
    %v228 = vpop.f32.mrb[0].mxu0
    %229 = vdwg.mxu0
    %v230 = vadd.f32 %v222, %v27
    %v231 = vadd.f32 %v227, %v28
    %v232 = vsel %vm40, %v230, 0.0
    %233 = vadd.xlane.f32.xlu0 %v232
    %v234 = vpop.xlane.xlu0 %233
    %v235 = vsel %vm40, %v231, 0.0
    %236 = vadd.xlane.f32.xlu0 %v235
    %v237 = vpop.xlane.xlu0 %236
    %v238 = vrcp.pop 32.0
    %v239 = vmul.f32 %v234, %v238
    %v240 = vmul.f32 %v237, %v238
    %v241 = vsub.f32 %v230, %v239
    %v242 = vsub.f32 %v231, %v240
    %v243 = vmul.f32 %v241, %v241
    %v244 = vmul.f32 %v242, %v242
    %v245 = vsel %vm40, %v243, 0.0
    %246 = vadd.xlane.f32.xlu0 %v245
    %v247 = vpop.xlane.xlu0 %246
    %v248 = vsel %vm40, %v244, 0.0
    %249 = vadd.xlane.f32.xlu0 %v248
    %v250 = vpop.xlane.xlu0 %249
    %v251 = vmul.f32 %v247, %v238
    %v252 = vmul.f32 %v250, %v238
    %v253 = vadd.f32 %v251, 1e-12
    %v254 = vadd.f32 %v252, 1e-12
    %v255 = vrsqrt.pop %v253
    %v256 = vrsqrt.pop %v254
    %v257 = vmul.f32 %v241, %v255
    %v258 = vmul.f32 %v242, %v256
    %v259 = vld [vmem:[%s5] sm:$0x1]
    %v261 = vlaneseq
    %v262 = vshrl.u32 %v261, 7
    %v263 = vsub.s32 0, %v262
    %v264 = vrot.slane %v259, %v263
    %v266 = vmul.f32 %v264, %v257
    %v267 = vmul.f32 %v264, %v258
    %v268 = vld [vmem:[%s6] sm:$0x1]
    %v270 = vlaneseq
    %v271 = vshrl.u32 %v270, 7
    %v272 = vsub.s32 0, %v271
    %v273 = vrot.slane %v268, %v272
    %v275 = vadd.f32 %v266, %v273
    %v276 = vadd.f32 %v267, %v273
    %277 = vst.msk [vmem:[#allocation2] sm:$0xff] %vm40, %v275
    %278 = vst.msk [vmem:[#allocation2 + $0x8] sm:$0xff] %vm40, %v276
    // Predicated region
    $region30: #{tpu_custom_call.1} parent=1 // pred_check
      _
    $region31: #{tpu_custom_call.1} parent=1 // pred_check_branch
      %280 = sbr.rel (0) target = $region33
    $region32: #{tpu_custom_call.1} parent=1 // pred_region
      %s282 = ssub.s32 256, 256
      %283 = vsyncadd [#allocation3], %s282
      %s284 = sshll.u32 [#allocation2], 4
      %s285 = int_to_ptr.vmem [resolvable:$true] %s284
      %290 = dma.vmem_to_hbm [thread:$0]  %s285, 256, %s7, [#allocation3], 128, 128, 8
    $region33: #{tpu_custom_call.1} parent=1 // pred_fallthru
      _
    // Predicated region
    $region34: #{tpu_custom_call.1} parent=1 // pred_check
      _
    $region35: #{tpu_custom_call.1} parent=1 // pred_check_branch
      %292 = sbr.rel (0) target = $region37
    $region36: #{tpu_custom_call.1} parent=1 // pred_region
      %293 = dma.done [#allocation3], 256
    $region37: #{tpu_custom_call.1} parent=1 // pred_fallthru
      _
    %294 = vsyncpa [#allocation3], 1

</llo_original>
